<compile_context>
chip_gen: v5e
topology: v5e:2x2
jax: 0.10.0
libtpu: 0.0.40
codegen_flags: <defaults>
</compile_context>

<pallas_src>
import functools

import numpy as np

import jax
import jax.numpy as jnp
from jax.experimental import pallas as pl
from jax.experimental.pallas import tpu as pltpu


def _cdiv(a, b):
    return (a + b - 1) // b


def _round_up(a, b):
    return _cdiv(a, b) * b


def _focal_loss_kernel(x_ref, t_ref, out_ref, *, gamma, alpha, mask_pad):
    """Per-tile focal loss.

    x_ref:   (1, C, S_TILE, 128) logits, native dtype.
    t_ref:   (1, 1, S_TILE, 128) int32 targets (-1 on padded positions).
    out_ref: (1, 1, 1, 128) f32 per-lane partial sums for this tile.
    """
    c = x_ref.shape[1]
    t = t_ref[0, 0]                                      # (S, 128) int32

    # Running max over class slabs: dense elementwise VPU max, no XLU
    # reduction, no (C,S,128) f32 temporary materialized.
    m = x_ref[0, 0].astype(jnp.float32)
    for ci in range(1, c):
        m = jnp.maximum(m, x_ref[0, ci].astype(jnp.float32))

    # Second pass over classes: accumulate sum(exp(x-m)) and pick out the
    # target-class (x - m) (and alpha) with masked selects.  The class index
    # is a static Python int, so no iota tile is ever built.
    se = jnp.zeros_like(m)
    xt_m = jnp.zeros_like(m)
    at = jnp.zeros_like(m) if alpha is not None else None
    for ci in range(c):
        xc = x_ref[0, ci].astype(jnp.float32) - m
        se = se + jnp.exp(xc)
        msk = t == ci
        xt_m = jnp.where(msk, xc, xt_m)
        if alpha is not None:
            at = jnp.where(msk, alpha[ci], at)

    logpt = xt_m - jnp.log(se)                           # log p_t, (S, 128)
    pt = jnp.exp(logpt)
    if alpha is not None:
        logpt = logpt * at

    one_minus_pt = 1.0 - pt
    g = float(gamma)
    if g.is_integer() and 0.0 <= g <= 64.0:
        # Integer gamma: exponentiation by squaring -- log2(g) multiplies,
        # no pow/log (so no NaN hazard when pt == 1).
        gi = int(g)
        w = None
        base = one_minus_pt
        while gi:
            if gi & 1:
                w = base if w is None else w * base
            gi >>= 1
            if gi:
                base = base * base
        if w is None:                                    # gamma == 0
            w = jnp.ones_like(pt)
    else:
        # General non-integer gamma; clamp avoids log of a tiny negative.
        w = jnp.power(jnp.maximum(one_minus_pt, 0.0), g)

    loss = -(w * logpt)                                  # (S, 128)
    if mask_pad:
        # Padded spatial positions carry target == -1.
        loss = jnp.where(t >= 0, loss, 0.0)

    # Sublane-only reduction -> (1,128) per-lane partials; the store stays a
    # single unmasked lane-dense vst.  Cross-lane sum happens in the epilogue.
    out_ref[...] = jnp.sum(loss, axis=0, keepdims=True)[None, None]


def focal_loss(x, target, gamma=0.0, alpha=None, size_average=True):
    """Pallas FocalLoss forward, matching the torch module's semantics.

    x:      (N, C, *spatial) or (M, C) logits, any float dtype.
    target: matching integer class indices.
    alpha:  None, a scalar (-> [alpha, 1-alpha] table, requires C <= 2), or a
            per-class sequence of length C.  Must be concrete (it is a
            constructor constant in the torch module); values are baked into
            the kernel as immediates.
    """
    x = jnp.asarray(x)
    target = jnp.asarray(target)

    if x.ndim > 2:
        n, c = x.shape[0], x.shape[1]
        x3 = x.reshape(n, c, -1)                         # (N, C, HW)
        t2 = target.reshape(n, -1).astype(jnp.int32)     # (N, HW)
    else:
        n, c = 1, x.shape[1]
        x3 = x.T[None]                                   # (1, C, M)
        t2 = target.reshape(1, -1).astype(jnp.int32)
    hw = x3.shape[2]

    # ---- alpha handling (mirrors the torch __init__ / gather semantics) ----
    if alpha is None:
        alpha_list = None
    elif isinstance(alpha, (float, int)) and not isinstance(alpha, bool):
        if c > 2:
            # torch builds a length-2 table; gathering class >= 2 would error.
            raise ValueError(
                f"scalar alpha gives a length-2 table; C={c} > 2 is out of range")
        alpha_list = tuple(float(v) for v in (float(alpha), 1.0 - float(alpha))[:c])
    else:
        a = np.asarray(alpha, dtype=np.float32).reshape(-1)
        if a.shape[0] != c:
            raise ValueError(
                f"per-class alpha length {a.shape[0]} != num classes {c}")
        alpha_list = tuple(float(v) for v in a)

    # ---- tile sizing from the real VMEM budget --------------------------
    try:
        vmem_cap = int(pltpu.get_tpu_info().vmem_capacity_bytes)
    except Exception:
        vmem_cap = 64 * 1024 * 1024                      # conservative (v7x)
    vmem_limit = min(vmem_cap * 3 // 4, 96 * 1024 * 1024)

    itemsize = x3.dtype.itemsize
    # Per-pixel VMEM footprint: double-buffered native logits + double-buffered
    # int32 targets + ~6 live dense f32 temporaries inside the kernel.
    per_px = 2 * c * itemsize + 2 * 4 + 6 * 4
    # Target DMA block: ~8 MiB on 128 MiB-VMEM parts (v5e/v6e), ~4 MiB on v7x.
    dma_target = 8 * 2**20 if vmem_cap >= 96 * 2**20 else 4 * 2**20
    max_px = min(dma_target // max(1, c * itemsize), (vmem_limit // 2) // per_px)
    max_px = max(1024, max_px)

    s_rows = _cdiv(hw, 128)                              # spatial sublane rows
    s_tile = max(8, (max_px // 128) // 8 * 8)
    s_tile = min(s_tile, _round_up(s_rows, 8))
    # v7x shards the "parallel" grid over 2 TensorCores: keep >= 2 grid steps
    # whenever the problem is large enough to split.
    if n * _cdiv(s_rows, s_tile) < 2 and s_rows > 8:
        s_tile = max(8, _round_up(_cdiv(s_rows, 2), 8))

    s_rows_pad = _round_up(s_rows, s_tile)
    hw_pad = s_rows_pad * 128
    if hw_pad != hw:
        x3 = jnp.pad(x3, ((0, 0), (0, 0), (0, hw_pad - hw)))
        t2 = jnp.pad(t2, ((0, 0), (0, hw_pad - hw)), constant_values=-1)
    x4 = x3.reshape(n, c, s_rows_pad, 128)               # free row-major reshape
    t4 = t2.reshape(n, 1, s_rows_pad, 128)

    grid = (n, s_rows_pad // s_tile)
    kernel = functools.partial(_focal_loss_kernel, gamma=float(gamma),
                               alpha=alpha_list, mask_pad=(hw_pad != hw))
    # NOTE: targets outside [0, C) in *unpadded* inputs are not validated
    # (torch would raise on the gather); only padded positions (-1) are masked.

    partials = pl.pallas_call(
        kernel,
        out_shape=jax.ShapeDtypeStruct((grid[0], grid[1], 1, 128), jnp.float32),
        grid=grid,
        in_specs=[
            pl.BlockSpec((1, c, s_tile, 128), lambda i, j: (i, 0, j, 0)),
            pl.BlockSpec((1, 1, s_tile, 128), lambda i, j: (i, 0, j, 0)),
        ],
        out_specs=pl.BlockSpec((1, 1, 1, 128), lambda i, j: (i, j, 0, 0)),
        compiler_params=pltpu.CompilerParams(
            dimension_semantics=("parallel", "parallel"),
            vmem_limit_bytes=vmem_limit),
    )(x4, t4)

    total = jnp.sum(partials)
    if size_average:
        total = total / (n * hw)
    return total


if __name__ == "__main__":
    key = jax.random.PRNGKey(0)
    kx, kt = jax.random.split(key)

    N, C, H, W = 2, 4, 16, 16
    x = jax.random.normal(kx, (N, C, H, W), jnp.float32)
    target = jax.random.randint(kt, (N, H, W), 0, C, dtype=jnp.int32)

    # deterministic "parameters" of the module
    gamma = 2.0
    alpha = [0.25, 0.75, 0.5, 0.5]                       # per-class alpha (len == C)
    size_average = True

    loss = focal_loss(x, target, gamma=gamma, alpha=alpha,
                      size_average=size_average)
    loss = jax.block_until_ready(loss)

    # pure-JAX reference (same math as the torch forward)
    x2 = x.reshape(N, C, -1).transpose(0, 2, 1).reshape(-1, C)
    t_flat = target.reshape(-1)
    logp = jax.nn.log_softmax(x2, axis=-1)
    logpt = jnp.take_along_axis(logp, t_flat[:, None], axis=1)[:, 0]
    pt = jnp.exp(logpt)
    at = jnp.asarray(alpha, jnp.float32)[t_flat]
    ref_loss = -((1.0 - pt) ** gamma) * (logpt * at)
    ref = ref_loss.mean() if size_average else ref_loss.sum()
    assert jnp.allclose(loss, ref, rtol=1e-5, atol=1e-6), (float(loss), float(ref))

    # default-constructor path: gamma=0, no alpha, sum reduction
    loss2 = jax.block_until_ready(
        focal_loss(x, target, gamma=0.0, alpha=None, size_average=False))
    ref2 = jnp.sum(-logpt)
    assert jnp.allclose(loss2, ref2, rtol=1e-5, atol=1e-5), (float(loss2), float(ref2))

    print("KERNEL_OK")
</pallas_src>

<mosaic_0001>
module attributes {stable_mosaic.version = 11 : i64} {
  func.func @_focal_loss_kernel(%arg0: i32, %arg1: i32, %arg2: memref<1x4x8x128xf32, #tpu.memory_space<vmem>>, %arg3: memref<1x1x8x128xi32, #tpu.memory_space<vmem>>, %arg4: memref<1x1x1x128xf32, #tpu.memory_space<vmem>>) attributes {dimension_semantics = [#tpu.dimension_semantics<parallel>, #tpu.dimension_semantics<parallel>], iteration_bounds = array<i64: 2, 1>, scalar_prefetch = 0 : i64, scratch_operands = 0 : i64, tpu.core_type = #tpu.core_type<tc>, window_params = [{transform_indices = @transform_0, window_bounds = array<i64: 1, 4, 8, 128>}, {transform_indices = @transform_1, window_bounds = array<i64: 1, 1, 8, 128>}, {transform_indices = @transform_2, window_bounds = array<i64: 1, 1, 1, 128>}]} {
    %c0 = arith.constant 0 : index
    %c0_0 = arith.constant 0 : index
    %c0_1 = arith.constant 0 : index
    %c0_2 = arith.constant 0 : index
    %0 = vector.load %arg3[%c0, %c0_0, %c0_1, %c0_2] : memref<1x1x8x128xi32, #tpu.memory_space<vmem>>, vector<1x1x8x128xi32>
    %1 = vector.shape_cast %0 : vector<1x1x8x128xi32> to vector<8x128xi32>
    %c0_3 = arith.constant 0 : index
    %c0_4 = arith.constant 0 : index
    %c0_5 = arith.constant 0 : index
    %c0_6 = arith.constant 0 : index
    %2 = vector.load %arg2[%c0_3, %c0_4, %c0_5, %c0_6] : memref<1x4x8x128xf32, #tpu.memory_space<vmem>>, vector<1x1x8x128xf32>
    %3 = vector.shape_cast %2 : vector<1x1x8x128xf32> to vector<8x128xf32>
    %c0_7 = arith.constant 0 : index
    %c1 = arith.constant 1 : index
    %c0_8 = arith.constant 0 : index
    %c0_9 = arith.constant 0 : index
    %4 = vector.load %arg2[%c0_7, %c1, %c0_8, %c0_9] : memref<1x4x8x128xf32, #tpu.memory_space<vmem>>, vector<1x1x8x128xf32>
    %5 = vector.shape_cast %4 : vector<1x1x8x128xf32> to vector<8x128xf32>
    %6 = arith.maximumf %3, %5 : vector<8x128xf32>
    %c0_10 = arith.constant 0 : index
    %c2 = arith.constant 2 : index
    %c0_11 = arith.constant 0 : index
    %c0_12 = arith.constant 0 : index
    %7 = vector.load %arg2[%c0_10, %c2, %c0_11, %c0_12] : memref<1x4x8x128xf32, #tpu.memory_space<vmem>>, vector<1x1x8x128xf32>
    %8 = vector.shape_cast %7 : vector<1x1x8x128xf32> to vector<8x128xf32>
    %9 = arith.maximumf %6, %8 : vector<8x128xf32>
    %c0_13 = arith.constant 0 : index
    %c3 = arith.constant 3 : index
    %c0_14 = arith.constant 0 : index
    %c0_15 = arith.constant 0 : index
    %10 = vector.load %arg2[%c0_13, %c3, %c0_14, %c0_15] : memref<1x4x8x128xf32, #tpu.memory_space<vmem>>, vector<1x1x8x128xf32>
    %11 = vector.shape_cast %10 : vector<1x1x8x128xf32> to vector<8x128xf32>
    %12 = arith.maximumf %9, %11 : vector<8x128xf32>
    %cst = arith.constant 0.000000e+00 : f32
    %13 = vector.broadcast %cst : f32 to vector<8x128xf32>
    %cst_16 = arith.constant 0.000000e+00 : f32
    %14 = vector.broadcast %cst_16 : f32 to vector<8x128xf32>
    %cst_17 = arith.constant 0.000000e+00 : f32
    %15 = vector.broadcast %cst_17 : f32 to vector<8x128xf32>
    %c0_18 = arith.constant 0 : index
    %c0_19 = arith.constant 0 : index
    %c0_20 = arith.constant 0 : index
    %c0_21 = arith.constant 0 : index
    %16 = vector.load %arg2[%c0_18, %c0_19, %c0_20, %c0_21] : memref<1x4x8x128xf32, #tpu.memory_space<vmem>>, vector<1x1x8x128xf32>
    %17 = vector.shape_cast %16 : vector<1x1x8x128xf32> to vector<8x128xf32>
    %18 = arith.subf %17, %12 : vector<8x128xf32>
    %19 = math.exp %18 : vector<8x128xf32>
    %20 = arith.addf %13, %19 : vector<8x128xf32>
    %c0_i32 = arith.constant 0 : i32
    %21 = vector.broadcast %c0_i32 : i32 to vector<8x128xi32>
    %22 = arith.cmpi eq, %1, %21 : vector<8x128xi32>
    %23 = arith.select %22, %18, %14 : vector<8x128xi1>, vector<8x128xf32>
    %cst_22 = arith.constant 2.500000e-01 : f32
    %24 = vector.broadcast %cst_22 : f32 to vector<8x128xf32>
    %25 = arith.select %22, %24, %15 : vector<8x128xi1>, vector<8x128xf32>
    %c0_23 = arith.constant 0 : index
    %c1_24 = arith.constant 1 : index
    %c0_25 = arith.constant 0 : index
    %c0_26 = arith.constant 0 : index
    %26 = vector.load %arg2[%c0_23, %c1_24, %c0_25, %c0_26] : memref<1x4x8x128xf32, #tpu.memory_space<vmem>>, vector<1x1x8x128xf32>
    %27 = vector.shape_cast %26 : vector<1x1x8x128xf32> to vector<8x128xf32>
    %28 = arith.subf %27, %12 : vector<8x128xf32>
    %29 = math.exp %28 : vector<8x128xf32>
    %30 = arith.addf %20, %29 : vector<8x128xf32>
    %c1_i32 = arith.constant 1 : i32
    %31 = vector.broadcast %c1_i32 : i32 to vector<8x128xi32>
    %32 = arith.cmpi eq, %1, %31 : vector<8x128xi32>
    %33 = arith.select %32, %28, %23 : vector<8x128xi1>, vector<8x128xf32>
    %cst_27 = arith.constant 7.500000e-01 : f32
    %34 = vector.broadcast %cst_27 : f32 to vector<8x128xf32>
    %35 = arith.select %32, %34, %25 : vector<8x128xi1>, vector<8x128xf32>
    %c0_28 = arith.constant 0 : index
    %c2_29 = arith.constant 2 : index
    %c0_30 = arith.constant 0 : index
    %c0_31 = arith.constant 0 : index
    %36 = vector.load %arg2[%c0_28, %c2_29, %c0_30, %c0_31] : memref<1x4x8x128xf32, #tpu.memory_space<vmem>>, vector<1x1x8x128xf32>
    %37 = vector.shape_cast %36 : vector<1x1x8x128xf32> to vector<8x128xf32>
    %38 = arith.subf %37, %12 : vector<8x128xf32>
    %39 = math.exp %38 : vector<8x128xf32>
    %40 = arith.addf %30, %39 : vector<8x128xf32>
    %c2_i32 = arith.constant 2 : i32
    %41 = vector.broadcast %c2_i32 : i32 to vector<8x128xi32>
    %42 = arith.cmpi eq, %1, %41 : vector<8x128xi32>
    %43 = arith.select %42, %38, %33 : vector<8x128xi1>, vector<8x128xf32>
    %cst_32 = arith.constant 5.000000e-01 : f32
    %44 = vector.broadcast %cst_32 : f32 to vector<8x128xf32>
    %45 = arith.select %42, %44, %35 : vector<8x128xi1>, vector<8x128xf32>
    %c0_33 = arith.constant 0 : index
    %c3_34 = arith.constant 3 : index
    %c0_35 = arith.constant 0 : index
    %c0_36 = arith.constant 0 : index
    %46 = vector.load %arg2[%c0_33, %c3_34, %c0_35, %c0_36] : memref<1x4x8x128xf32, #tpu.memory_space<vmem>>, vector<1x1x8x128xf32>
    %47 = vector.shape_cast %46 : vector<1x1x8x128xf32> to vector<8x128xf32>
    %48 = arith.subf %47, %12 : vector<8x128xf32>
    %49 = math.exp %48 : vector<8x128xf32>
    %50 = arith.addf %40, %49 : vector<8x128xf32>
    %c3_i32 = arith.constant 3 : i32
    %51 = vector.broadcast %c3_i32 : i32 to vector<8x128xi32>
    %52 = arith.cmpi eq, %1, %51 : vector<8x128xi32>
    %53 = arith.select %52, %48, %43 : vector<8x128xi1>, vector<8x128xf32>
    %cst_37 = arith.constant 5.000000e-01 : f32
    %54 = vector.broadcast %cst_37 : f32 to vector<8x128xf32>
    %55 = arith.select %52, %54, %45 : vector<8x128xi1>, vector<8x128xf32>
    %56 = math.log %50 : vector<8x128xf32>
    %57 = arith.subf %53, %56 : vector<8x128xf32>
    %58 = math.exp %57 : vector<8x128xf32>
    %59 = arith.mulf %57, %55 : vector<8x128xf32>
    %cst_38 = arith.constant 1.000000e+00 : f32
    %60 = vector.broadcast %cst_38 : f32 to vector<8x128xf32>
    %61 = arith.subf %60, %58 : vector<8x128xf32>
    %62 = arith.mulf %61, %61 : vector<8x128xf32>
    %63 = arith.mulf %62, %59 : vector<8x128xf32>
    %cst_39 = arith.constant 0.000000e+00 : f32
    %64 = vector.broadcast %cst_39 : f32 to vector<8x128xf32>
    %65 = arith.subf %64, %63 : vector<8x128xf32>
    %c0_i32_40 = arith.constant 0 : i32
    %66 = vector.broadcast %c0_i32_40 : i32 to vector<8x128xi32>
    %67 = arith.cmpi sge, %1, %66 : vector<8x128xi32>
    %cst_41 = arith.constant 0.000000e+00 : f32
    %68 = vector.broadcast %cst_41 : f32 to vector<8x128xf32>
    %69 = arith.select %67, %65, %68 : vector<8x128xi1>, vector<8x128xf32>
    %cst_42 = arith.constant dense<0.000000e+00> : vector<128xf32>
    %70 = vector.multi_reduction <add>, %69, %cst_42 [0] : vector<8x128xf32> to vector<128xf32>
    %71 = vector.shape_cast %70 : vector<128xf32> to vector<1x128xf32>
    %72 = vector.shape_cast %71 : vector<1x128xf32> to vector<1x1x1x128xf32>
    %c0_43 = arith.constant 0 : index
    %c0_44 = arith.constant 0 : index
    %c0_45 = arith.constant 0 : index
    %c0_46 = arith.constant 0 : index
    %73 = vector.load %arg4[%c0_43, %c0_44, %c0_45, %c0_46] : memref<1x1x1x128xf32, #tpu.memory_space<vmem>>, vector<1x1x1x128xf32>
    tpu.vector_store %arg4[%c0_43, %c0_44, %c0_45, %c0_46], %72 {strides = array<i32>} : memref<1x1x1x128xf32, #tpu.memory_space<vmem>>, vector<1x1x1x128xf32>,
    return
  }
  func.func @transform_0(%arg0: i32, %arg1: i32) -> (i32, i32, i32, i32) {
    %c0_i32 = arith.constant 0 : i32
    %c0_i32_0 = arith.constant 0 : i32
    %c0_i32_1 = arith.constant 0 : i32
    return %arg0, %c0_i32, %arg1, %c0_i32_0 : i32, i32, i32, i32
  }
  func.func @transform_1(%arg0: i32, %arg1: i32) -> (i32, i32, i32, i32) {
    %c0_i32 = arith.constant 0 : i32
    %c0_i32_0 = arith.constant 0 : i32
    %c0_i32_1 = arith.constant 0 : i32
    return %arg0, %c0_i32, %arg1, %c0_i32_0 : i32, i32, i32, i32
  }
  func.func @transform_2(%arg0: i32, %arg1: i32) -> (i32, i32, i32, i32) {
    %c0_i32 = arith.constant 0 : i32
    %c0_i32_0 = arith.constant 0 : i32
    %c0_i32_1 = arith.constant 0 : i32
    return %arg0, %arg1, %c0_i32, %c0_i32_0 : i32, i32, i32, i32
  }
}

</mosaic_0001>

<llo_original>
// kernel: tpu_custom_call.1
$region0: #{tpu_custom_call.1}
  #allocation0 [shape = 'u32[]', space=smem, size = 0x4, offset = 0x4, fixed_abs, tag = 'smem constant byte address 0x4 - core index']
  #allocation1 [shape = 'u32[72,128]{1,0:T(1,128)}', space=vmem, size = 0x9000, scoped, tag = 'internal scratch']
  %s0 = inlined_call_operand.hbm [shape: f32[2,4,8,128], index: 0, kind: input, shape index: {}]
  %s1 = inlined_call_operand.hbm [shape: s32[2,1,8,128], index: 1, kind: input, shape index: {}]
  %s2 = inlined_call_operand.hbm [shape: f32[2,1,1,128], index: 2, kind: output, shape index: {}]
  %s3 = sld [smem:[#allocation0]]
  $region49: #{tpu_custom_call.1} parent=0
    _
  %s5 = ssub.s32 1, %s3
  %s6 = scalar_select 0, %s5, %s3
  $region1: #{tpu_custom_call.1} parent=0
    #allocation2 [shape = 'u8[32768]{0}', space=vmem, size = 0x8000, scoped, tag = 'input window, operand 0']
    #allocation3 [shape = 's32[2]{0}', space=sflag, size = 0x8, scoped, tag = 'scoped memory for tpu_custom_call.1']
    #allocation4 [shape = 's32[2]{0}', space=sflag, size = 0x8, scoped, tag = 'scoped memory for tpu_custom_call.1']
    #allocation5 [shape = 'u8[8192]{0}', space=vmem, size = 0x2000, scoped, tag = 'input window, operand 1']
    #allocation6 [shape = 's32[2]{0}', space=sflag, size = 0x8, scoped, tag = 'scoped memory for tpu_custom_call.1']
    #allocation7 [shape = 'u8[1024]{0}', space=vmem, size = 0x400, scoped, tag = 'output window, operand 0']
    %7 = vsyncpa [#allocation3], 0
    %s8 = scalar_lea.sflag [#allocation3], 1
    %9 = vsyncpa %s8, 0
    %10 = vsyncpa [#allocation6], 0
    %s11 = scalar_lea.sflag [#allocation6], 1
    %12 = vsyncpa %s11, 0
    %13 = vsyncpa [#allocation4], 0
    %s14 = scalar_lea.sflag [#allocation4], 1
    %15 = vsyncpa %s14, 0
    loop: start=0, step=1, limit=4
    $region2: #{tpu_custom_call.1} parent=1 // loop_pre_header
      _
    $region3: #{tpu_custom_call.1} parent=1 // loop_header
      %s17 = sphi 0, %s21
      %p18 = scmp.ge.s32.totalorder %s17, 4
      %s24 = sphi 0, %s36
      %s25 = sphi 0, %s32
      %s26 = sphi 0, %s24
      %s27 = sphi 0, %s25
      %s28 = sphi 0, %s26
      %s29 = sphi 0, %s27
      %s41 = sphi 0, %s43
      %s44 = sphi 0, %s41
      %s45 = sphi 0, %s44
      %s61 = sphi 0, %s45
      %s69 = sphi 0, %s71
      %s72 = sphi 0, %s69
      %s73 = sphi 0, %s72
      %s89 = sphi 0, %s73
      %s97 = sphi 0, %s99
      %s100 = sphi 0, %s97
      %s101 = sphi 0, %s100
      %s117 = sphi 0, %s101
    $region4: #{tpu_custom_call.1} parent=1 // loop_header_branch
      %20 = sbr.rel (%p18) target = $region8
    $region5: #{tpu_custom_call.1} parent=1 // loop_body
      %s22 = ssub.s32 %s17, 1
      %s23 = ssub.s32 %s17, 2
      %s30 = sadd.s32 1, %s25
      %p31 = scmp.ge.s32.totalorder %s30, 1
      %s32 = scalar_select %p31, 0, %s30
      %s33 = sadd.s32 1, %s24
      %s34 = scalar_select %p31, %s33, %s24
      %p35 = scmp.ge.s32.totalorder %s34, 2
      %s36 = scalar_select %p35, 0, %s34
      %s37 = ssub.s32 %s24, %s36
      %s38 = ssub.s32 %s25, %s32
      %s39 = sor.u32 %s37, %s38
      %p40 = scmp.eq.s32.totalorder %s39, 0
      %s42 = sadd.s32 %s41, 1
      %s43 = scalar_select %p40, %s41, %s42
      %p46 = pneg %p40
      %p47 = scmp.eq.s32.totalorder %s17, 1
      %p48 = por %p46, %p47
      %p49 = scmp.ne.s32.totalorder %s41, %s44
      %p50 = scmp.eq.s32.totalorder %s17, 0
      %p51 = por %p49, %p50
      %p52 = scmp.ne.s32.totalorder %s41, %s44
      %p53 = scmp.eq.s32.totalorder %s22, 1
      %p54 = por %p52, %p53
      %p55 = scmp.ne.s32.totalorder %s44, %s45
      %p56 = scmp.eq.s32.totalorder %s22, 0
      %p57 = por %p55, %p56
      %p58 = scmp.ne.s32.totalorder %s44, %s45
      %p59 = scmp.eq.s32.totalorder %s23, 1
      %p60 = por %p58, %p59
      %p62 = scmp.ne.s32.totalorder %s45, %s61
      %p63 = scmp.eq.s32.totalorder %s23, 0
      %p64 = por %p62, %p63
      %s65 = ssub.s32 %s24, %s36
      %s66 = ssub.s32 %s25, %s32
      %s67 = sor.u32 %s65, %s66
      %p68 = scmp.eq.s32.totalorder %s67, 0
      %s70 = sadd.s32 %s69, 1
      %s71 = scalar_select %p68, %s69, %s70
      %p74 = pneg %p68
      %p75 = scmp.eq.s32.totalorder %s17, 1
      %p76 = por %p74, %p75
      %p77 = scmp.ne.s32.totalorder %s69, %s72
      %p78 = scmp.eq.s32.totalorder %s17, 0
      %p79 = por %p77, %p78
      %p80 = scmp.ne.s32.totalorder %s69, %s72
      %p81 = scmp.eq.s32.totalorder %s22, 1
      %p82 = por %p80, %p81
      %p83 = scmp.ne.s32.totalorder %s72, %s73
      %p84 = scmp.eq.s32.totalorder %s22, 0
      %p85 = por %p83, %p84
      %p86 = scmp.ne.s32.totalorder %s72, %s73
      %p87 = scmp.eq.s32.totalorder %s23, 1
      %p88 = por %p86, %p87
      %p90 = scmp.ne.s32.totalorder %s73, %s89
      %p91 = scmp.eq.s32.totalorder %s23, 0
      %p92 = por %p90, %p91
      %s93 = ssub.s32 %s24, %s36
      %s94 = ssub.s32 %s25, %s32
      %s95 = sor.u32 %s93, %s94
      %p96 = scmp.eq.s32.totalorder %s95, 0
      %s98 = sadd.s32 %s97, 1
      %s99 = scalar_select %p96, %s97, %s98
      %p102 = pneg %p96
      %p103 = scmp.eq.s32.totalorder %s17, 1
      %p104 = por %p102, %p103
      %p105 = scmp.ne.s32.totalorder %s97, %s100
      %p106 = scmp.eq.s32.totalorder %s17, 0
      %p107 = por %p105, %p106
      %p108 = scmp.ne.s32.totalorder %s97, %s100
      %p109 = scmp.eq.s32.totalorder %s22, 1
      %p110 = por %p108, %p109
      %p111 = scmp.ne.s32.totalorder %s100, %s101
      %p112 = scmp.eq.s32.totalorder %s22, 0
      %p113 = por %p111, %p112
      %p114 = scmp.ne.s32.totalorder %s100, %s101
      %p115 = scmp.eq.s32.totalorder %s23, 1
      %p116 = por %p114, %p115
      %p118 = scmp.ne.s32.totalorder %s101, %s117
      %p119 = scmp.eq.s32.totalorder %s23, 0
      %p120 = por %p118, %p119
      %p121 = scmp.le.s32.totalorder 1, %s17
      %p122 = scmp.lt.s32.totalorder %s17, 3
      %p123 = pnand %p121, %p122
      %p124 = pneg %p123
      // Predicated region
      $region9: #{tpu_custom_call.1} parent=5 // pred_check
        _
      $region10: #{tpu_custom_call.1} parent=5 // pred_check_branch
        %126 = sbr.rel (%p123) target = $region12
      $region11: #{tpu_custom_call.1} parent=5 // pred_region
        %s127 = ssub.s32 %s17, 1
      $region12: #{tpu_custom_call.1} parent=5 // pred_fallthru
        _
      %p128 = scmp.lt.s32.totalorder %s17, 2
      // Predicated region
      $region13: #{tpu_custom_call.1} parent=5 // pred_check
        %p129 = pneg %p128
      $region14: #{tpu_custom_call.1} parent=5 // pred_check_branch
        %131 = sbr.rel (%p129) target = $region16
      $region15: #{tpu_custom_call.1} parent=5 // pred_region
        // Predicated region
        $region17: #{tpu_custom_call.1} parent=15 // pred_check
          %p132 = pneg %p51
        $region18: #{tpu_custom_call.1} parent=15 // pred_check_branch
          %134 = sbr.rel (%p132) target = $region20
        $region19: #{tpu_custom_call.1} parent=15 // pred_region
          %s135 = sand.u32 %s41, 1
          %s136 = scalar_lea.sflag [#allocation3], %s135
          %s137 = sand.u32 %s41, 1
          %s138 = smul.addr %s137, 32
          %s139 = scalar_lea.vmem [#allocation2], %s138
          %141 = vsyncadd %s136, 0
          %s142 = smul.addr %s24, 4
          %s143 = sadd.s32 %s25, %s142
          %s144 = smul.addr %s143, 8
          %s145 = scalar_lea.hbm %s0, %s144
          %s146 = sshll.u32 %s145, 4
          %s147 = int_to_ptr.hbm [resolvable:$true] %s146
          %s148 = sshll.u32 %s139, 4
          %s149 = int_to_ptr.vmem [resolvable:$true] %s148
          %154 = dma.hbm_to_vmem [thread:$0]  %s147, 512, %s149, %s136, 128, 128, 8
        $region20: #{tpu_custom_call.1} parent=15 // pred_fallthru
          _
        // Predicated region
        $region21: #{tpu_custom_call.1} parent=15 // pred_check
          %p155 = pneg %p79
        $region22: #{tpu_custom_call.1} parent=15 // pred_check_branch
          %157 = sbr.rel (%p155) target = $region24
        $region23: #{tpu_custom_call.1} parent=15 // pred_region
          %s158 = sand.u32 %s69, 1
          %s159 = scalar_lea.sflag [#allocation6], %s158
          %s160 = sand.u32 %s69, 1
          %s161 = smul.addr %s160, 8
          %s162 = scalar_lea.vmem [#allocation5], %s161
          %164 = vsyncadd %s159, 0
          %s165 = sadd.s32 %s25, %s24
          %s166 = smul.addr %s165, 8
          %s167 = scalar_lea.hbm %s1, %s166
          %s169 = sshll.u32 %s167, 4
          %s170 = int_to_ptr.hbm [resolvable:$true] %s169
          %s171 = sshll.u32 %s162, 4
          %s172 = int_to_ptr.vmem [resolvable:$true] %s171
          %174 = dma.hbm_to_vmem [thread:$0]  %s170, 128, %s172, %s159
        $region24: #{tpu_custom_call.1} parent=15 // pred_fallthru
          _
      $region16: #{tpu_custom_call.1} parent=5 // pred_fallthru
        _
      %p175 = scmp.le.s32.totalorder 1, %s17
      %p176 = scmp.lt.s32.totalorder %s17, 3
      %p177 = pnand %p175, %p176
      %p178 = pneg %p177
      // Predicated region
      $region25: #{tpu_custom_call.1} parent=5 // pred_check
        _
      $region26: #{tpu_custom_call.1} parent=5 // pred_check_branch
        %180 = sbr.rel (%p177) target = $region28
      $region27: #{tpu_custom_call.1} parent=5 // pred_region
        %s181 = ssub.s32 %s17, 1
        %s182 = sand.u32 %s44, 1
        %s183 = scalar_lea.sflag [#allocation3], %s182
        %s184 = sand.u32 %s44, 1
        %s185 = smul.addr %s184, 32
        %s186 = scalar_lea.vmem [#allocation2], %s185
        // Predicated region
        $region29: #{tpu_custom_call.1} parent=27 // pred_check
          %p187 = pneg %p57
        $region30: #{tpu_custom_call.1} parent=27 // pred_check_branch
          %189 = sbr.rel (%p187) target = $region32
        $region31: #{tpu_custom_call.1} parent=27 // pred_region
          %191 = dma.done %s183, 512
        $region32: #{tpu_custom_call.1} parent=27 // pred_fallthru
          _
        %s192 = sand.u32 %s72, 1
        %s193 = scalar_lea.sflag [#allocation6], %s192
        %s194 = sand.u32 %s72, 1
        %s195 = smul.addr %s194, 8
        %s196 = scalar_lea.vmem [#allocation5], %s195
        // Predicated region
        $region33: #{tpu_custom_call.1} parent=27 // pred_check
          %p197 = pneg %p85
        $region34: #{tpu_custom_call.1} parent=27 // pred_check_branch
          %199 = sbr.rel (%p197) target = $region36
        $region35: #{tpu_custom_call.1} parent=27 // pred_region
          %201 = dma.done %s193, 128
        $region36: #{tpu_custom_call.1} parent=27 // pred_fallthru
          _
        %s202 = sand.u32 %s44, 1
        %s203 = scalar_lea.sflag [#allocation3], %s202
        %s204 = sand.u32 %s44, 1
        %s205 = smul.addr %s204, 32
        %s206 = scalar_lea.vmem [#allocation2], %s205
        %p207 = pneg %p57
        %p208 = pneg %p54
        %s209 = sand.u32 %s72, 1
        %s210 = scalar_lea.sflag [#allocation6], %s209
        %s211 = sand.u32 %s72, 1
        %s212 = smul.addr %s211, 8
        %s213 = scalar_lea.vmem [#allocation5], %s212
        %p214 = pneg %p85
        %p215 = pneg %p82
        %p216 = pneg %p113
        %p217 = pneg %p110
        %s218 = sand.u32 %s100, 1
        %s219 = scalar_lea.sflag [#allocation4], %s218
        %s220 = sand.u32 %s100, 1
        %s221 = scalar_lea.vmem [#allocation7], %s220
        %v222 = vld [vmem:[%s196] sm:$0xff]
        %v223 = vld [vmem:[%s186] sm:$0xff]
        %s224 = scalar_lea.vmem %s186, 8 [#allocation2]
        %v225 = vld [vmem:[%s224] sm:$0xff]
        %v226 = vmax.f32 %v223, %v225
        %s227 = scalar_lea.vmem %s186, 16 [#allocation2]
        %v228 = vld [vmem:[%s227] sm:$0xff]
        %v229 = vmax.f32 %v226, %v228
        %s230 = scalar_lea.vmem %s186, 24 [#allocation2]
        %v231 = vld [vmem:[%s230] sm:$0xff]
        %v232 = vmax.f32 %v229, %v231
        %v233 = vsub.f32 %v223, %v232
        %v234 = vmul.f32 %v233, 1.442695
        %v235 = vpow.pop %v234
        %v236 = vadd.f32 %v235, 0.0
        %vm237 = vcmp.eq.s32.totalorder %v222, 0
        %v238 = vsel %vm237, %v233, 0.0
        %v239 = vsel %vm237, 0.25, 0.0
        %v240 = vsub.f32 %v225, %v232
        %v241 = vmul.f32 %v240, 1.442695
        %v242 = vpow.pop %v241
        %v243 = vadd.f32 %v236, %v242
        %vm244 = vcmp.eq.s32.totalorder %v222, 1
        %v245 = vsel %vm244, %v240, %v238
        %v246 = vsel %vm244, 0.75, %v239
        %v247 = vsub.f32 %v228, %v232
        %v248 = vmul.f32 %v247, 1.442695
        %v249 = vpow.pop %v248
        %v250 = vadd.f32 %v243, %v249
        %vm251 = vcmp.eq.s32.totalorder %v222, 2
        %v252 = vsel %vm251, %v247, %v245
        %v253 = vsel %vm251, 0.5, %v246
        %v254 = vsub.f32 %v231, %v232
        %v255 = vmul.f32 %v254, 1.442695
        %v256 = vpow.pop %v255
        %v257 = vadd.f32 %v250, %v256
        %vm258 = vcmp.eq.s32.totalorder %v222, 3
        %v259 = vsel %vm258, %v254, %v252
        %v260 = vsel %vm258, 0.5, %v253
        %v261 = vlog2.pop %v257
        %v262 = vmul.f32 %v261, 0.6931472
        %v263 = vsub.f32 %v259, %v262
        %v264 = vmul.f32 %v263, 1.442695
        %v265 = vpow.pop %v264
        %v266 = vmul.f32 %v263, %v260
        %v267 = vsub.f32 1.0, %v265
        %v268 = vmul.f32 %v267, %v267
        %v269 = vmul.f32 %v268, %v266
        %v270 = vsub.f32 0.0, %v269
        %vm271 = vcmp.ge.s32.totalorder %v222, 0
        %v272 = vsel %vm271, %v270, 0.0
        %v273 = vrot.slane %v272, 4
        %v274 = vadd.f32 %v272, %v273
        %v275 = vrot.slane %v274, 2
        %v276 = vadd.f32 %v274, %v275
        %v277 = vrot.slane %v276, 1
        %v278 = vadd.f32 %v276, %v277
        %279 = vst [vmem:[%s221] sm:$0x1] %v278
        %s280 = sand.u32 %s100, 1
        %s281 = scalar_lea.sflag [#allocation4], %s280
        %s282 = sand.u32 %s100, 1
        %s283 = scalar_lea.vmem [#allocation7], %s282
        // Predicated region
        $region37: #{tpu_custom_call.1} parent=27 // pred_check
          %p284 = pneg %p110
        $region38: #{tpu_custom_call.1} parent=27 // pred_check_branch
          %286 = sbr.rel (%p284) target = $region40
        $region39: #{tpu_custom_call.1} parent=27 // pred_region
          %288 = vsyncadd %s281, 0
          %s289 = sadd.s32 %s27, %s26
          %s290 = scalar_lea.hbm %s2, %s289
          %s292 = sshll.u32 %s283, 4
          %s293 = int_to_ptr.vmem [resolvable:$true] %s292
          %s294 = sshll.u32 %s290, 4
          %s295 = int_to_ptr.hbm [resolvable:$true] %s294
          %297 = dma.vmem_to_hbm [thread:$0]  %s293, 16, %s295, %s281
        $region40: #{tpu_custom_call.1} parent=27 // pred_fallthru
          _
      $region28: #{tpu_custom_call.1} parent=5 // pred_fallthru
        _
      %p298 = scmp.le.s32.totalorder 2, %s17
      // Predicated region
      $region41: #{tpu_custom_call.1} parent=5 // pred_check
        %p299 = pneg %p298
      $region42: #{tpu_custom_call.1} parent=5 // pred_check_branch
        %301 = sbr.rel (%p299) target = $region44
      $region43: #{tpu_custom_call.1} parent=5 // pred_region
        %s302 = ssub.s32 %s17, 2
        // Predicated region
        $region45: #{tpu_custom_call.1} parent=43 // pred_check
          %p303 = pneg %p116
        $region46: #{tpu_custom_call.1} parent=43 // pred_check_branch
          %305 = sbr.rel (%p303) target = $region48
        $region47: #{tpu_custom_call.1} parent=43 // pred_region
          %s306 = sand.u32 %s101, 1
          %s307 = scalar_lea.sflag [#allocation4], %s306
          %s308 = sand.u32 %s101, 1
          %s309 = scalar_lea.vmem [#allocation7], %s308
          %311 = dma.done %s307, 16
        $region48: #{tpu_custom_call.1} parent=43 // pred_fallthru
          _
      $region44: #{tpu_custom_call.1} parent=5 // pred_fallthru
        _
    $region6: #{tpu_custom_call.1} parent=1 // loop_footer
      %s21 = sadd.s32 1, %s17
    $region7: #{tpu_custom_call.1} parent=1 // loop_footer_branch
      %16 = sbr.rel target = $region3
    $region8: #{tpu_custom_call.1} parent=1 // loop_exit
      _
    %312 = vsyncpa [#allocation3], 1
    %s313 = scalar_lea.sflag [#allocation3], 1
    %314 = vsyncpa %s313, 1
    %315 = vsyncpa [#allocation6], 1
    %s316 = scalar_lea.sflag [#allocation6], 1
    %317 = vsyncpa %s316, 1
    %318 = vsyncpa [#allocation4], 1
    %s319 = scalar_lea.sflag [#allocation4], 1
    %320 = vsyncpa %s319, 1

</llo_original>
